<compile_context>
chip_gen: v7x
topology: tpu7x:2x2x1
jax: 0.10.0
libtpu: 0.0.40
codegen_flags: <defaults>
</compile_context>

<pallas_src>
import functools

import jax
import jax.numpy as jnp
from jax import lax
from jax.experimental import pallas as pl
from jax.experimental.pallas import tpu as pltpu

# Problem sizes (small, consistent with an image-denoising module).
N, CIN, H, W = 2, 4, 16, 16
CHID = 8            # hidden channels of the reconstruction network (multiple of 8)
K = 3               # 3x3 convolutions, SAME padding
SUBLANE = 8         # channel / row padding granularity (sublane width)


def cbd_recon_kernel(x_ref, const_ref, w1_ref, w2_ref, out_ref, taps_ref, *, ww):
    """Reconstruction network for a lane-folded batch in (C, N*H*W) layout.

    x_ref     : (CP, L)               channel-padded input, L = images*H*W
    const_ref : (16, L)               rows 0-7: boundary masks for the 8
                                      non-center taps; row 8: ones (bias tap);
                                      rows 9-15: zeros
    w1_ref    : (CHID, 9*CP + 8)      conv1 weights + bias column block
    w2_ref    : (CP,   9*CHID + 8)    conv2 weights (out-ch padded) + bias cols
    out_ref   : (CP, L)
    taps_ref  : (9*CP + 8, L) f32     persistent VMEM scratch for the tap matrix
    """
    x = x_ref[...].astype(jnp.float32)                 # (CP, L) lane-dense
    consts = const_ref[...]                            # (16, L)
    cp = x.shape[0]
    lanes = x.shape[1]
    n_tap_rows = 9 * cp

    # Constant "bias tap" rows: [ones; zeros x7] (rows 8..15 of the const block).
    taps_ref[n_tap_rows:n_tap_rows + SUBLANE, :] = consts[SUBLANE:2 * SUBLANE, :]

    def write_taps(v):
        """Write the 9 shifted/masked copies of v into taps_ref rows [0, 9*C)."""
        c = v.shape[0]
        for t in range(9):
            kh, kw = divmod(t, 3)
            dh, dw = kh - 1, kw - 1
            delta = dh * ww + dw
            if delta == 0:                              # center tap, no mask
                tap = v
            else:
                # rolled[:, i] == v[:, i + delta]; invalid (cross-boundary /
                # cross-image) positions are zeroed by the precomputed mask.
                tap = pltpu.roll(v, (-delta) % lanes, axis=1)
                r = t if t < 4 else t - 1               # mask row for this tap
                tap = tap * consts[r:r + 1, :]
            taps_ref[t * c:(t + 1) * c, :] = tap

    # ---- conv1 (3x3 SAME) + bias + ReLU: one MXU matmul --------------------
    write_taps(x)
    hid = jnp.maximum(
        jnp.dot(w1_ref[...].astype(jnp.float32), taps_ref[...],
                preferred_element_type=jnp.float32), 0.0)      # (CHID, L)

    # ---- conv2 (3x3 SAME) + bias: one MXU matmul, then residual ------------
    write_taps(hid)
    y = jnp.dot(w2_ref[...].astype(jnp.float32), taps_ref[...],
                preferred_element_type=jnp.float32)            # (CP, L)

    # Residual add on the full padded block; aligned full-tile store.
    out_ref[...] = (y + x).astype(out_ref.dtype)


def _make_consts(h, w, images):
    """(16, images*h*w) constant block: 8 tap masks, a ones row, 7 zero rows."""
    hw = h * w
    lanes = images * hw
    j = jnp.arange(lanes, dtype=jnp.int32)
    p = j % hw                      # per-image flat position
    hi = p // w
    wi = p % w
    rows = []
    for kh in range(K):
        for kw in range(K):
            dh, dw = kh - 1, kw - 1
            if dh == 0 and dw == 0:
                continue
            m = jnp.ones((lanes,), jnp.bool_)
            if dh == -1:
                m = m & (hi >= 1)
            elif dh == 1:
                m = m & (hi < h - 1)
            if dw == -1:
                m = m & (wi >= 1)
            elif dw == 1:
                m = m & (wi < w - 1)
            rows.append(m.astype(jnp.float32))
    rows.append(jnp.ones((lanes,), jnp.float32))        # row 8: bias "ones tap"
    for _ in range(SUBLANE - 1):
        rows.append(jnp.zeros((lanes,), jnp.float32))   # rows 9..15: padding
    return jnp.stack(rows, axis=0)                      # (16, lanes)


def cbd_forward(x_nchw, w1, b1, w2, b2, images_per_block=None):
    """CBDNetwork.forward: runs the reconstruction network (Pallas kernel)."""
    n, c, h, w = x_nchw.shape
    hw = h * w
    chid = w1.shape[-1]
    cp = ((c + SUBLANE - 1) // SUBLANE) * SUBLANE
    assert chid % SUBLANE == 0 and chid == cp, \
        "shared tap scratch / bias fold assumes CHID == padded CIN"
    ipb = n if images_per_block is None else images_per_block
    assert n % ipb == 0
    lanes = ipb * hw

    # layout: NCHW -> (CP, N*H*W); channels on sublanes, batch*spatial on lanes.
    x_flat = jnp.transpose(x_nchw, (1, 0, 2, 3)).reshape(c, n * hw)
    if cp != c:
        x_flat = jnp.concatenate(
            [x_flat, jnp.zeros((cp - c, n * hw), x_flat.dtype)], axis=0)

    # conv1 weights: HWIO (3,3,c,chid) -> (chid, 9*cp) with padded in-channels;
    # bias folded in as 8 trailing columns (column 0 = b1).
    w1p = w1
    if cp != c:
        w1p = jnp.concatenate(
            [w1, jnp.zeros((K, K, cp - c, chid), w1.dtype)], axis=2)
    w1m = w1p.reshape(K * K * cp, chid).T
    w1e = jnp.concatenate(
        [w1m, b1.reshape(chid, 1), jnp.zeros((chid, SUBLANE - 1), w1.dtype)],
        axis=1)                                                 # (chid, 9*cp+8)

    # conv2 weights: HWIO (3,3,chid,c) -> (cp, 9*chid) with padded OUT channels;
    # bias folded likewise (padded bias rows are zero).
    w2p = w2
    b2p = b2.reshape(c, 1)
    if cp != c:
        w2p = jnp.concatenate(
            [w2, jnp.zeros((K, K, chid, cp - c), w2.dtype)], axis=3)
        b2p = jnp.concatenate([b2p, jnp.zeros((cp - c, 1), w2.dtype)], axis=0)
    w2m = w2p.reshape(K * K * chid, cp).T
    w2e = jnp.concatenate(
        [w2m, b2p, jnp.zeros((cp, SUBLANE - 1), w2.dtype)], axis=1)  # (cp, 9*chid+8)

    consts = _make_consts(h, w, ipb)                     # (16, lanes)

    kernel = functools.partial(cbd_recon_kernel, ww=w)
    out_flat = pl.pallas_call(
        kernel,
        out_shape=jax.ShapeDtypeStruct((cp, n * hw), x_nchw.dtype),
        grid_spec=pltpu.PrefetchScalarGridSpec(
            num_scalar_prefetch=0,
            grid=(n // ipb,),
            in_specs=[
                pl.BlockSpec((cp, lanes), lambda i: (0, i)),
                pl.BlockSpec((2 * SUBLANE, lanes), lambda i: (0, 0)),
                pl.BlockSpec((chid, K * K * cp + SUBLANE), lambda i: (0, 0)),
                pl.BlockSpec((cp, K * K * chid + SUBLANE), lambda i: (0, 0)),
            ],
            out_specs=pl.BlockSpec((cp, lanes), lambda i: (0, i)),
            scratch_shapes=[pltpu.VMEM((K * K * cp + SUBLANE, lanes),
                                       jnp.float32)],
        ),
        compiler_params=pltpu.CompilerParams(
            dimension_semantics=("parallel",)),
    )(x_flat, consts, w1e, w2e)

    out = out_flat[:c].reshape(c, n, h, w)               # drop padded channels
    return jnp.transpose(out, (1, 0, 2, 3))              # back to NCHW


def reference_forward(x_nchw, w1, b1, w2, b2):
    """Pure-JAX reference (lax convs) for correctness checking."""
    x = jnp.transpose(x_nchw, (0, 2, 3, 1))
    dn = ('NHWC', 'HWIO', 'NHWC')
    hh = lax.conv_general_dilated(x, w1, (1, 1), 'SAME', dimension_numbers=dn)
    hh = jax.nn.relu(hh + b1.reshape(1, 1, 1, -1))
    y = lax.conv_general_dilated(hh, w2, (1, 1), 'SAME', dimension_numbers=dn)
    y = y + b2.reshape(1, 1, 1, -1) + x
    return jnp.transpose(y, (0, 3, 1, 2))


if __name__ == "__main__":
    key = jax.random.PRNGKey(0)
    kx, k1, k2, k3, k4 = jax.random.split(key, 5)

    # Deterministic synthetic parameters (reconstruction_network weights).
    x = jax.random.normal(kx, (N, CIN, H, W), jnp.float32)            # NCHW input
    w1 = jax.random.normal(k1, (K, K, CIN, CHID), jnp.float32) * 0.1  # HWIO
    b1 = jax.random.normal(k2, (1, CHID), jnp.float32) * 0.1
    w2 = jax.random.normal(k3, (K, K, CHID, CIN), jnp.float32) * 0.1  # HWIO
    b2 = jax.random.normal(k4, (1, CIN), jnp.float32) * 0.1
    # TODO(synk): noise_predictor is ignored by CBDNetwork.forward, so no
    # parameters are materialized for it.

    out = jax.block_until_ready(cbd_forward(x, w1, b1, w2, b2))
    ref = jax.block_until_ready(reference_forward(x, w1, b1, w2, b2))

    assert out.shape == (N, CIN, H, W)
    assert jnp.allclose(out, ref, atol=2e-4, rtol=2e-4), \
        f"max err {jnp.max(jnp.abs(out - ref))}"
    print("KERNEL_OK")
</pallas_src>

<mosaic_0001>
module attributes {stable_mosaic.version = 11 : i64} {
  func.func @cbd_recon_kernel(%arg0: i32, %arg1: memref<8x512xf32, #tpu.memory_space<vmem>>, %arg2: memref<16x512xf32, #tpu.memory_space<vmem>>, %arg3: memref<8x80xf32, #tpu.memory_space<vmem>>, %arg4: memref<8x80xf32, #tpu.memory_space<vmem>>, %arg5: memref<8x512xf32, #tpu.memory_space<vmem>>, %arg6: memref<80x512xf32, #tpu.memory_space<vmem>>) attributes {dimension_semantics = [#tpu.dimension_semantics<parallel>], iteration_bounds = array<i64: 1>, scalar_prefetch = 0 : i64, scratch_operands = 1 : i64, tpu.core_type = #tpu.core_type<tc>, window_params = [{transform_indices = @transform_0, window_bounds = array<i64: 8, 512>}, {pipeline_mode = #tpu.pipeline_mode<synchronous>, transform_indices = @transform_1, window_bounds = array<i64: 16, 512>}, {pipeline_mode = #tpu.pipeline_mode<synchronous>, transform_indices = @transform_2, window_bounds = array<i64: 8, 80>}, {pipeline_mode = #tpu.pipeline_mode<synchronous>, transform_indices = @transform_3, window_bounds = array<i64: 8, 80>}, {transform_indices = @transform_4, window_bounds = array<i64: 8, 512>}]} {
    %c0 = arith.constant 0 : index
    %c0_0 = arith.constant 0 : index
    %0 = vector.load %arg1[%c0, %c0_0] : memref<8x512xf32, #tpu.memory_space<vmem>>, vector<8x512xf32>
    %c0_1 = arith.constant 0 : index
    %c0_2 = arith.constant 0 : index
    %1 = vector.load %arg2[%c0_1, %c0_2] : memref<16x512xf32, #tpu.memory_space<vmem>>, vector<16x512xf32>
    %2 = vector.extract_strided_slice %1 {offsets = [8, 0], sizes = [8, 512], strides = [1, 1]} : vector<16x512xf32> to vector<8x512xf32>
    %c72 = arith.constant 72 : index
    %c0_3 = arith.constant 0 : index
    %3 = vector.load %arg6[%c72, %c0_3] : memref<80x512xf32, #tpu.memory_space<vmem>>, vector<8x512xf32>
    tpu.vector_store %arg6[%c72, %c0_3], %2 {strides = array<i32>} : memref<80x512xf32, #tpu.memory_space<vmem>>, vector<8x512xf32>,
    %c17_i32 = arith.constant 17 : i32
    %4 = tpu.dynamic_rotate %0 by %c17_i32 dim 1 : vector<8x512xf32>, i32 -> vector<8x512xf32>
    %5 = vector.extract_strided_slice %1 {offsets = [0, 0], sizes = [1, 512], strides = [1, 1]} : vector<16x512xf32> to vector<1x512xf32>
    %6 = vector.broadcast %5 : vector<1x512xf32> to vector<8x512xf32>
    %7 = arith.mulf %4, %6 : vector<8x512xf32>
    %c0_4 = arith.constant 0 : index
    %c0_5 = arith.constant 0 : index
    %8 = vector.load %arg6[%c0_4, %c0_5] : memref<80x512xf32, #tpu.memory_space<vmem>>, vector<8x512xf32>
    tpu.vector_store %arg6[%c0_4, %c0_5], %7 {strides = array<i32>} : memref<80x512xf32, #tpu.memory_space<vmem>>, vector<8x512xf32>,
    %c16_i32 = arith.constant 16 : i32
    %9 = tpu.dynamic_rotate %0 by %c16_i32 dim 1 : vector<8x512xf32>, i32 -> vector<8x512xf32>
    %10 = vector.extract_strided_slice %1 {offsets = [1, 0], sizes = [1, 512], strides = [1, 1]} : vector<16x512xf32> to vector<1x512xf32>
    %11 = vector.broadcast %10 : vector<1x512xf32> to vector<8x512xf32>
    %12 = arith.mulf %9, %11 : vector<8x512xf32>
    %c8 = arith.constant 8 : index
    %c0_6 = arith.constant 0 : index
    %13 = vector.load %arg6[%c8, %c0_6] : memref<80x512xf32, #tpu.memory_space<vmem>>, vector<8x512xf32>
    tpu.vector_store %arg6[%c8, %c0_6], %12 {strides = array<i32>} : memref<80x512xf32, #tpu.memory_space<vmem>>, vector<8x512xf32>,
    %c15_i32 = arith.constant 15 : i32
    %14 = tpu.dynamic_rotate %0 by %c15_i32 dim 1 : vector<8x512xf32>, i32 -> vector<8x512xf32>
    %15 = vector.extract_strided_slice %1 {offsets = [2, 0], sizes = [1, 512], strides = [1, 1]} : vector<16x512xf32> to vector<1x512xf32>
    %16 = vector.broadcast %15 : vector<1x512xf32> to vector<8x512xf32>
    %17 = arith.mulf %14, %16 : vector<8x512xf32>
    %c16 = arith.constant 16 : index
    %c0_7 = arith.constant 0 : index
    %18 = vector.load %arg6[%c16, %c0_7] : memref<80x512xf32, #tpu.memory_space<vmem>>, vector<8x512xf32>
    tpu.vector_store %arg6[%c16, %c0_7], %17 {strides = array<i32>} : memref<80x512xf32, #tpu.memory_space<vmem>>, vector<8x512xf32>,
    %c1_i32 = arith.constant 1 : i32
    %19 = tpu.dynamic_rotate %0 by %c1_i32 dim 1 : vector<8x512xf32>, i32 -> vector<8x512xf32>
    %20 = vector.extract_strided_slice %1 {offsets = [3, 0], sizes = [1, 512], strides = [1, 1]} : vector<16x512xf32> to vector<1x512xf32>
    %21 = vector.broadcast %20 : vector<1x512xf32> to vector<8x512xf32>
    %22 = arith.mulf %19, %21 : vector<8x512xf32>
    %c24 = arith.constant 24 : index
    %c0_8 = arith.constant 0 : index
    %23 = vector.load %arg6[%c24, %c0_8] : memref<80x512xf32, #tpu.memory_space<vmem>>, vector<8x512xf32>
    tpu.vector_store %arg6[%c24, %c0_8], %22 {strides = array<i32>} : memref<80x512xf32, #tpu.memory_space<vmem>>, vector<8x512xf32>,
    %c32 = arith.constant 32 : index
    %c0_9 = arith.constant 0 : index
    %24 = vector.load %arg6[%c32, %c0_9] : memref<80x512xf32, #tpu.memory_space<vmem>>, vector<8x512xf32>
    tpu.vector_store %arg6[%c32, %c0_9], %0 {strides = array<i32>} : memref<80x512xf32, #tpu.memory_space<vmem>>, vector<8x512xf32>,
    %c511_i32 = arith.constant 511 : i32
    %25 = tpu.dynamic_rotate %0 by %c511_i32 dim 1 : vector<8x512xf32>, i32 -> vector<8x512xf32>
    %26 = vector.extract_strided_slice %1 {offsets = [4, 0], sizes = [1, 512], strides = [1, 1]} : vector<16x512xf32> to vector<1x512xf32>
    %27 = vector.broadcast %26 : vector<1x512xf32> to vector<8x512xf32>
    %28 = arith.mulf %25, %27 : vector<8x512xf32>
    %c40 = arith.constant 40 : index
    %c0_10 = arith.constant 0 : index
    %29 = vector.load %arg6[%c40, %c0_10] : memref<80x512xf32, #tpu.memory_space<vmem>>, vector<8x512xf32>
    tpu.vector_store %arg6[%c40, %c0_10], %28 {strides = array<i32>} : memref<80x512xf32, #tpu.memory_space<vmem>>, vector<8x512xf32>,
    %c497_i32 = arith.constant 497 : i32
    %30 = tpu.dynamic_rotate %0 by %c497_i32 dim 1 : vector<8x512xf32>, i32 -> vector<8x512xf32>
    %31 = vector.extract_strided_slice %1 {offsets = [5, 0], sizes = [1, 512], strides = [1, 1]} : vector<16x512xf32> to vector<1x512xf32>
    %32 = vector.broadcast %31 : vector<1x512xf32> to vector<8x512xf32>
    %33 = arith.mulf %30, %32 : vector<8x512xf32>
    %c48 = arith.constant 48 : index
    %c0_11 = arith.constant 0 : index
    %34 = vector.load %arg6[%c48, %c0_11] : memref<80x512xf32, #tpu.memory_space<vmem>>, vector<8x512xf32>
    tpu.vector_store %arg6[%c48, %c0_11], %33 {strides = array<i32>} : memref<80x512xf32, #tpu.memory_space<vmem>>, vector<8x512xf32>,
    %c496_i32 = arith.constant 496 : i32
    %35 = tpu.dynamic_rotate %0 by %c496_i32 dim 1 : vector<8x512xf32>, i32 -> vector<8x512xf32>
    %36 = vector.extract_strided_slice %1 {offsets = [6, 0], sizes = [1, 512], strides = [1, 1]} : vector<16x512xf32> to vector<1x512xf32>
    %37 = vector.broadcast %36 : vector<1x512xf32> to vector<8x512xf32>
    %38 = arith.mulf %35, %37 : vector<8x512xf32>
    %c56 = arith.constant 56 : index
    %c0_12 = arith.constant 0 : index
    %39 = vector.load %arg6[%c56, %c0_12] : memref<80x512xf32, #tpu.memory_space<vmem>>, vector<8x512xf32>
    tpu.vector_store %arg6[%c56, %c0_12], %38 {strides = array<i32>} : memref<80x512xf32, #tpu.memory_space<vmem>>, vector<8x512xf32>,
    %c495_i32 = arith.constant 495 : i32
    %40 = tpu.dynamic_rotate %0 by %c495_i32 dim 1 : vector<8x512xf32>, i32 -> vector<8x512xf32>
    %41 = vector.extract_strided_slice %1 {offsets = [7, 0], sizes = [1, 512], strides = [1, 1]} : vector<16x512xf32> to vector<1x512xf32>
    %42 = vector.broadcast %41 : vector<1x512xf32> to vector<8x512xf32>
    %43 = arith.mulf %40, %42 : vector<8x512xf32>
    %c64 = arith.constant 64 : index
    %c0_13 = arith.constant 0 : index
    %44 = vector.load %arg6[%c64, %c0_13] : memref<80x512xf32, #tpu.memory_space<vmem>>, vector<8x512xf32>
    tpu.vector_store %arg6[%c64, %c0_13], %43 {strides = array<i32>} : memref<80x512xf32, #tpu.memory_space<vmem>>, vector<8x512xf32>,
    %c0_14 = arith.constant 0 : index
    %c0_15 = arith.constant 0 : index
    %45 = vector.load %arg3[%c0_14, %c0_15] : memref<8x80xf32, #tpu.memory_space<vmem>>, vector<8x80xf32>
    %c0_16 = arith.constant 0 : index
    %c0_17 = arith.constant 0 : index
    %46 = vector.load %arg6[%c0_16, %c0_17] : memref<80x512xf32, #tpu.memory_space<vmem>>, vector<80x512xf32>
    %cst = arith.constant dense<0.000000e+00> : vector<8x512xf32>
    %47 = tpu.matmul %45, %46, %cst {dimension_numbers = #tpu.dot_dimension_numbers<[1], [0], [0], [1], [0, 0, 1, 1], [], []>} : vector<8x80xf32>, vector<80x512xf32>, vector<8x512xf32> -> vector<8x512xf32>
    %cst_18 = arith.constant 0.000000e+00 : f32
    %48 = vector.broadcast %cst_18 : f32 to vector<8x512xf32>
    %49 = arith.maximumf %47, %48 : vector<8x512xf32>
    %c17_i32_19 = arith.constant 17 : i32
    %50 = tpu.dynamic_rotate %49 by %c17_i32_19 dim 1 : vector<8x512xf32>, i32 -> vector<8x512xf32>
    %51 = vector.extract_strided_slice %1 {offsets = [0, 0], sizes = [1, 512], strides = [1, 1]} : vector<16x512xf32> to vector<1x512xf32>
    %52 = vector.broadcast %51 : vector<1x512xf32> to vector<8x512xf32>
    %53 = arith.mulf %50, %52 : vector<8x512xf32>
    %c0_20 = arith.constant 0 : index
    %c0_21 = arith.constant 0 : index
    %54 = vector.load %arg6[%c0_20, %c0_21] : memref<80x512xf32, #tpu.memory_space<vmem>>, vector<8x512xf32>
    tpu.vector_store %arg6[%c0_20, %c0_21], %53 {strides = array<i32>} : memref<80x512xf32, #tpu.memory_space<vmem>>, vector<8x512xf32>,
    %c16_i32_22 = arith.constant 16 : i32
    %55 = tpu.dynamic_rotate %49 by %c16_i32_22 dim 1 : vector<8x512xf32>, i32 -> vector<8x512xf32>
    %56 = vector.extract_strided_slice %1 {offsets = [1, 0], sizes = [1, 512], strides = [1, 1]} : vector<16x512xf32> to vector<1x512xf32>
    %57 = vector.broadcast %56 : vector<1x512xf32> to vector<8x512xf32>
    %58 = arith.mulf %55, %57 : vector<8x512xf32>
    %c8_23 = arith.constant 8 : index
    %c0_24 = arith.constant 0 : index
    %59 = vector.load %arg6[%c8_23, %c0_24] : memref<80x512xf32, #tpu.memory_space<vmem>>, vector<8x512xf32>
    tpu.vector_store %arg6[%c8_23, %c0_24], %58 {strides = array<i32>} : memref<80x512xf32, #tpu.memory_space<vmem>>, vector<8x512xf32>,
    %c15_i32_25 = arith.constant 15 : i32
    %60 = tpu.dynamic_rotate %49 by %c15_i32_25 dim 1 : vector<8x512xf32>, i32 -> vector<8x512xf32>
    %61 = vector.extract_strided_slice %1 {offsets = [2, 0], sizes = [1, 512], strides = [1, 1]} : vector<16x512xf32> to vector<1x512xf32>
    %62 = vector.broadcast %61 : vector<1x512xf32> to vector<8x512xf32>
    %63 = arith.mulf %60, %62 : vector<8x512xf32>
    %c16_26 = arith.constant 16 : index
    %c0_27 = arith.constant 0 : index
    %64 = vector.load %arg6[%c16_26, %c0_27] : memref<80x512xf32, #tpu.memory_space<vmem>>, vector<8x512xf32>
    tpu.vector_store %arg6[%c16_26, %c0_27], %63 {strides = array<i32>} : memref<80x512xf32, #tpu.memory_space<vmem>>, vector<8x512xf32>,
    %c1_i32_28 = arith.constant 1 : i32
    %65 = tpu.dynamic_rotate %49 by %c1_i32_28 dim 1 : vector<8x512xf32>, i32 -> vector<8x512xf32>
    %66 = vector.extract_strided_slice %1 {offsets = [3, 0], sizes = [1, 512], strides = [1, 1]} : vector<16x512xf32> to vector<1x512xf32>
    %67 = vector.broadcast %66 : vector<1x512xf32> to vector<8x512xf32>
    %68 = arith.mulf %65, %67 : vector<8x512xf32>
    %c24_29 = arith.constant 24 : index
    %c0_30 = arith.constant 0 : index
    %69 = vector.load %arg6[%c24_29, %c0_30] : memref<80x512xf32, #tpu.memory_space<vmem>>, vector<8x512xf32>
    tpu.vector_store %arg6[%c24_29, %c0_30], %68 {strides = array<i32>} : memref<80x512xf32, #tpu.memory_space<vmem>>, vector<8x512xf32>,
    %c32_31 = arith.constant 32 : index
    %c0_32 = arith.constant 0 : index
    %70 = vector.load %arg6[%c32_31, %c0_32] : memref<80x512xf32, #tpu.memory_space<vmem>>, vector<8x512xf32>
    tpu.vector_store %arg6[%c32_31, %c0_32], %49 {strides = array<i32>} : memref<80x512xf32, #tpu.memory_space<vmem>>, vector<8x512xf32>,
    %c511_i32_33 = arith.constant 511 : i32
    %71 = tpu.dynamic_rotate %49 by %c511_i32_33 dim 1 : vector<8x512xf32>, i32 -> vector<8x512xf32>
    %72 = vector.extract_strided_slice %1 {offsets = [4, 0], sizes = [1, 512], strides = [1, 1]} : vector<16x512xf32> to vector<1x512xf32>
    %73 = vector.broadcast %72 : vector<1x512xf32> to vector<8x512xf32>
    %74 = arith.mulf %71, %73 : vector<8x512xf32>
    %c40_34 = arith.constant 40 : index
    %c0_35 = arith.constant 0 : index
    %75 = vector.load %arg6[%c40_34, %c0_35] : memref<80x512xf32, #tpu.memory_space<vmem>>, vector<8x512xf32>
    tpu.vector_store %arg6[%c40_34, %c0_35], %74 {strides = array<i32>} : memref<80x512xf32, #tpu.memory_space<vmem>>, vector<8x512xf32>,
    %c497_i32_36 = arith.constant 497 : i32
    %76 = tpu.dynamic_rotate %49 by %c497_i32_36 dim 1 : vector<8x512xf32>, i32 -> vector<8x512xf32>
    %77 = vector.extract_strided_slice %1 {offsets = [5, 0], sizes = [1, 512], strides = [1, 1]} : vector<16x512xf32> to vector<1x512xf32>
    %78 = vector.broadcast %77 : vector<1x512xf32> to vector<8x512xf32>
    %79 = arith.mulf %76, %78 : vector<8x512xf32>
    %c48_37 = arith.constant 48 : index
    %c0_38 = arith.constant 0 : index
    %80 = vector.load %arg6[%c48_37, %c0_38] : memref<80x512xf32, #tpu.memory_space<vmem>>, vector<8x512xf32>
    tpu.vector_store %arg6[%c48_37, %c0_38], %79 {strides = array<i32>} : memref<80x512xf32, #tpu.memory_space<vmem>>, vector<8x512xf32>,
    %c496_i32_39 = arith.constant 496 : i32
    %81 = tpu.dynamic_rotate %49 by %c496_i32_39 dim 1 : vector<8x512xf32>, i32 -> vector<8x512xf32>
    %82 = vector.extract_strided_slice %1 {offsets = [6, 0], sizes = [1, 512], strides = [1, 1]} : vector<16x512xf32> to vector<1x512xf32>
    %83 = vector.broadcast %82 : vector<1x512xf32> to vector<8x512xf32>
    %84 = arith.mulf %81, %83 : vector<8x512xf32>
    %c56_40 = arith.constant 56 : index
    %c0_41 = arith.constant 0 : index
    %85 = vector.load %arg6[%c56_40, %c0_41] : memref<80x512xf32, #tpu.memory_space<vmem>>, vector<8x512xf32>
    tpu.vector_store %arg6[%c56_40, %c0_41], %84 {strides = array<i32>} : memref<80x512xf32, #tpu.memory_space<vmem>>, vector<8x512xf32>,
    %c495_i32_42 = arith.constant 495 : i32
    %86 = tpu.dynamic_rotate %49 by %c495_i32_42 dim 1 : vector<8x512xf32>, i32 -> vector<8x512xf32>
    %87 = vector.extract_strided_slice %1 {offsets = [7, 0], sizes = [1, 512], strides = [1, 1]} : vector<16x512xf32> to vector<1x512xf32>
    %88 = vector.broadcast %87 : vector<1x512xf32> to vector<8x512xf32>
    %89 = arith.mulf %86, %88 : vector<8x512xf32>
    %c64_43 = arith.constant 64 : index
    %c0_44 = arith.constant 0 : index
    %90 = vector.load %arg6[%c64_43, %c0_44] : memref<80x512xf32, #tpu.memory_space<vmem>>, vector<8x512xf32>
    tpu.vector_store %arg6[%c64_43, %c0_44], %89 {strides = array<i32>} : memref<80x512xf32, #tpu.memory_space<vmem>>, vector<8x512xf32>,
    %c0_45 = arith.constant 0 : index
    %c0_46 = arith.constant 0 : index
    %91 = vector.load %arg4[%c0_45, %c0_46] : memref<8x80xf32, #tpu.memory_space<vmem>>, vector<8x80xf32>
    %c0_47 = arith.constant 0 : index
    %c0_48 = arith.constant 0 : index
    %92 = vector.load %arg6[%c0_47, %c0_48] : memref<80x512xf32, #tpu.memory_space<vmem>>, vector<80x512xf32>
    %cst_49 = arith.constant dense<0.000000e+00> : vector<8x512xf32>
    %93 = tpu.matmul %91, %92, %cst_49 {dimension_numbers = #tpu.dot_dimension_numbers<[1], [0], [0], [1], [0, 0, 1, 1], [], []>} : vector<8x80xf32>, vector<80x512xf32>, vector<8x512xf32> -> vector<8x512xf32>
    %94 = arith.addf %93, %0 : vector<8x512xf32>
    %c0_50 = arith.constant 0 : index
    %c0_51 = arith.constant 0 : index
    %95 = vector.load %arg5[%c0_50, %c0_51] : memref<8x512xf32, #tpu.memory_space<vmem>>, vector<8x512xf32>
    tpu.vector_store %arg5[%c0_50, %c0_51], %94 {strides = array<i32>} : memref<8x512xf32, #tpu.memory_space<vmem>>, vector<8x512xf32>,
    return
  }
  func.func @transform_0(%arg0: i32) -> (i32, i32) {
    %c0_i32 = arith.constant 0 : i32
    %c0_i32_0 = arith.constant 0 : i32
    return %c0_i32, %arg0 : i32, i32
  }
  func.func @transform_1(%arg0: i32) -> (i32, i32) {
    %c0_i32 = arith.constant 0 : i32
    %c0_i32_0 = arith.constant 0 : i32
    %c0_i32_1 = arith.constant 0 : i32
    return %c0_i32, %c0_i32_0 : i32, i32
  }
  func.func @transform_2(%arg0: i32) -> (i32, i32) {
    %c0_i32 = arith.constant 0 : i32
    %c0_i32_0 = arith.constant 0 : i32
    %c0_i32_1 = arith.constant 0 : i32
    return %c0_i32, %c0_i32_0 : i32, i32
  }
  func.func @transform_3(%arg0: i32) -> (i32, i32) {
    %c0_i32 = arith.constant 0 : i32
    %c0_i32_0 = arith.constant 0 : i32
    %c0_i32_1 = arith.constant 0 : i32
    return %c0_i32, %c0_i32_0 : i32, i32
  }
  func.func @transform_4(%arg0: i32) -> (i32, i32) {
    %c0_i32 = arith.constant 0 : i32
    %c0_i32_0 = arith.constant 0 : i32
    return %c0_i32, %arg0 : i32, i32
  }
}

</mosaic_0001>

<llo_original>
// kernel: tpu_custom_call.1
$region0: #{tpu_custom_call.1}
  #allocation0 [shape = 'u32[]', space=smem, size = 0x4, offset = 0x4, fixed_abs, tag = 'smem constant byte address 0x4 - core index']
  #allocation1 [shape = 'u32[144,128]{1,0:T(1,128)}', space=vmem, size = 0x12000, scoped, tag = 'internal scratch']
  #allocation2 [shape = 'f32[80,512]{1,0:T(8,128)}', space=vmem, size = 0x28000, scoped, tag = 'scratch operand']
  %s0 = inlined_call_operand.hbm [shape: f32[8,512], index: 0, kind: input, shape index: {}]
  %s1 = inlined_call_operand.hbm [shape: f32[16,512], index: 1, kind: input, shape index: {}]
  %s2 = inlined_call_operand.hbm [shape: f32[8,80], index: 2, kind: input, shape index: {}]
  %s3 = inlined_call_operand.vmem [shape: f32[8,80], index: 3, kind: input, shape index: {}]
  %s4 = inlined_call_operand.hbm [shape: f32[8,512], index: 4, kind: output, shape index: {}]
  %s5 = sld [smem:[#allocation0]]
  $region38: #{tpu_custom_call.1} parent=0
    _
  %s7 = ssub.s32 1, %s5
  %s8 = scalar_select 0, %s7, %s5
  $region1: #{tpu_custom_call.1} parent=0
    #allocation3 [shape = 'u8[16384]{0}', space=vmem, size = 0x4000, scoped, tag = 'input window, operand 0, single buffered']
    #allocation4 [shape = 's32[1]{0}', space=sflag, size = 0x4, scoped, tag = 'scoped memory for tpu_custom_call.1']
    #allocation5 [shape = 's32[1]{0}', space=sflag, size = 0x4, scoped, tag = 'scoped memory for tpu_custom_call.1']
    #allocation6 [shape = 'u8[32768]{0}', space=vmem, size = 0x8000, scoped, tag = 'input window, operand 1, single buffered']
    #allocation7 [shape = 's32[1]{0}', space=sflag, size = 0x4, scoped, tag = 'scoped memory for tpu_custom_call.1']
    #allocation8 [shape = 'u8[4096]{0}', space=vmem, size = 0x1000, scoped, tag = 'input window, operand 2, single buffered']
    #allocation9 [shape = 'u8[16384]{0}', space=vmem, size = 0x4000, scoped, tag = 'output window, operand 0, single buffered']
    %9 = vsyncpa [#allocation4], 0
    %10 = vsyncpa [#allocation7], 0
    %11 = vsyncpa [#allocation5], 0
    // Predicated region
    $region2: #{tpu_custom_call.1} parent=1 // pred_check
      _
    $region3: #{tpu_custom_call.1} parent=1 // pred_check_branch
      %13 = sbr.rel (0) target = $region5
    $region4: #{tpu_custom_call.1} parent=1 // pred_region
      %s15 = ssub.s32 512, 512
      %16 = vsyncadd [#allocation4], %s15
      %s18 = sshll.u32 [#allocation3], 4
      %s19 = int_to_ptr.vmem [resolvable:$true] %s18
      %21 = dma.hbm_to_vmem [thread:$0]  %s0, 512, %s19, [#allocation4]
    $region5: #{tpu_custom_call.1} parent=1 // pred_fallthru
      _
    // Predicated region
    $region6: #{tpu_custom_call.1} parent=1 // pred_check
      _
    $region7: #{tpu_custom_call.1} parent=1 // pred_check_branch
      %23 = sbr.rel (0) target = $region9
    $region8: #{tpu_custom_call.1} parent=1 // pred_region
      %s25 = ssub.s32 1024, 1024
      %26 = vsyncadd [#allocation7], %s25
      %s27 = sshll.u32 [#allocation6], 4
      %s28 = int_to_ptr.vmem [resolvable:$true] %s27
      %33 = dma.hbm_to_vmem [thread:$0]  %s1, 1024, %s28, [#allocation7], 512, 512, 32
    $region9: #{tpu_custom_call.1} parent=1 // pred_fallthru
      _
    // Predicated region
    $region10: #{tpu_custom_call.1} parent=1 // pred_check
      _
    $region11: #{tpu_custom_call.1} parent=1 // pred_check_branch
      %35 = sbr.rel (0) target = $region13
    $region12: #{tpu_custom_call.1} parent=1 // pred_region
      %s37 = ssub.s32 128, 128
      %38 = vsyncadd [#allocation7], %s37
      %s40 = sshll.u32 [#allocation8], 4
      %s41 = int_to_ptr.vmem [resolvable:$true] %s40
      %43 = dma.hbm_to_vmem [thread:$0]  %s2, 128, %s41, [#allocation7]
    $region13: #{tpu_custom_call.1} parent=1 // pred_fallthru
      _
    // Predicated region
    $region14: #{tpu_custom_call.1} parent=1 // pred_check
      _
    $region15: #{tpu_custom_call.1} parent=1 // pred_check_branch
      %45 = sbr.rel (0) target = $region17
    $region16: #{tpu_custom_call.1} parent=1 // pred_region
      _
    $region17: #{tpu_custom_call.1} parent=1 // pred_fallthru
      _
    // Predicated region
    $region18: #{tpu_custom_call.1} parent=1 // pred_check
      _
    $region19: #{tpu_custom_call.1} parent=1 // pred_check_branch
      %47 = sbr.rel (0) target = $region21
    $region20: #{tpu_custom_call.1} parent=1 // pred_region
      %48 = dma.done [#allocation4], 512
    $region21: #{tpu_custom_call.1} parent=1 // pred_fallthru
      _
    // Predicated region
    $region22: #{tpu_custom_call.1} parent=1 // pred_check
      _
    $region23: #{tpu_custom_call.1} parent=1 // pred_check_branch
      %50 = sbr.rel (0) target = $region25
    $region24: #{tpu_custom_call.1} parent=1 // pred_region
      %51 = dma.done [#allocation7], 1024
    $region25: #{tpu_custom_call.1} parent=1 // pred_fallthru
      _
    // Predicated region
    $region26: #{tpu_custom_call.1} parent=1 // pred_check
      _
    $region27: #{tpu_custom_call.1} parent=1 // pred_check_branch
      %53 = sbr.rel (0) target = $region29
    $region28: #{tpu_custom_call.1} parent=1 // pred_region
      %54 = dma.done [#allocation7], 128
    $region29: #{tpu_custom_call.1} parent=1 // pred_fallthru
      _
    %v55 = vld [vmem:[#allocation3] sm:$0xff]
    %v56 = vld [vmem:[#allocation3 + $0x8] sm:$0xff]
    %v57 = vld [vmem:[#allocation3 + $0x10] sm:$0xff]
    %v58 = vld [vmem:[#allocation3 + $0x18] sm:$0xff]
    %v59 = vld [vmem:[#allocation6] sm:$0xff]
    %v60 = vld [vmem:[#allocation6 + $0x8] sm:$0xff]
    %v61 = vld [vmem:[#allocation6 + $0x10] sm:$0xff]
    %v62 = vld [vmem:[#allocation6 + $0x18] sm:$0xff]
    %v63 = vld [vmem:[#allocation6 + $0x20] sm:$0xff]
    %v64 = vld [vmem:[#allocation6 + $0x28] sm:$0xff]
    %v65 = vld [vmem:[#allocation6 + $0x30] sm:$0xff]
    %v66 = vld [vmem:[#allocation6 + $0x38] sm:$0xff]
    %67 = vst [vmem:[#allocation2 + $0x120] sm:$0xff] %v63
    %68 = vst [vmem:[#allocation2 + $0x128] sm:$0xff] %v64
    %69 = vst [vmem:[#allocation2 + $0x130] sm:$0xff] %v65
    %70 = vst [vmem:[#allocation2 + $0x138] sm:$0xff] %v66
    %71 = vrot.lane.b32.xlu0 %v55, 17
    %v72 = vpop.permute.xlu0 %71
    %73 = vrot.lane.b32.xlu0 %v56, 17
    %v74 = vpop.permute.xlu0 %73
    %75 = vrot.lane.b32.xlu0 %v57, 17
    %v76 = vpop.permute.xlu0 %75
    %77 = vrot.lane.b32.xlu0 %v58, 17
    %v78 = vpop.permute.xlu0 %77
    %v79 = vlaneseq
    %v80 = vand.u32 %v79, 127
    %vm81 = vcmp.lt.s32.totalorder %v80, 17
    %v82 = vsel %vm81, %v76, %v78
    %v83 = vsel %vm81, %v74, %v76
    %v84 = vsel %vm81, %v72, %v74
    %v85 = vsel %vm81, %v78, %v72
    %v86 = vlaneseq
    %v87 = vshrl.u32 %v86, 7
    %v88 = vsub.s32 0, %v87
    %v89 = vrot.slane %v59, %v88
    %v90 = vlaneseq
    %v91 = vshrl.u32 %v90, 7
    %v92 = vsub.s32 0, %v91
    %v93 = vrot.slane %v60, %v92
    %v94 = vlaneseq
    %v95 = vshrl.u32 %v94, 7
    %v96 = vsub.s32 0, %v95
    %v97 = vrot.slane %v61, %v96
    %v98 = vlaneseq
    %v99 = vshrl.u32 %v98, 7
    %v100 = vsub.s32 0, %v99
    %v101 = vrot.slane %v62, %v100
    %v102 = vmul.f32 %v85, %v89
    %v103 = vmul.f32 %v84, %v93
    %v104 = vmul.f32 %v83, %v97
    %v105 = vmul.f32 %v82, %v101
    %106 = vst [vmem:[#allocation2] sm:$0xff] %v102
    %107 = vst [vmem:[#allocation2 + $0x8] sm:$0xff] %v103
    %108 = vst [vmem:[#allocation2 + $0x10] sm:$0xff] %v104
    %109 = vst [vmem:[#allocation2 + $0x18] sm:$0xff] %v105
    %110 = vrot.lane.b32.xlu0 %v55, 16
    %v111 = vpop.permute.xlu0 %110
    %112 = vrot.lane.b32.xlu0 %v56, 16
    %v113 = vpop.permute.xlu0 %112
    %114 = vrot.lane.b32.xlu0 %v57, 16
    %v115 = vpop.permute.xlu0 %114
    %116 = vrot.lane.b32.xlu0 %v58, 16
    %v117 = vpop.permute.xlu0 %116
    %vm118 = vcmp.lt.s32.totalorder %v80, 16
    %v119 = vsel %vm118, %v115, %v117
    %v120 = vsel %vm118, %v113, %v115
    %v121 = vsel %vm118, %v111, %v113
    %v122 = vsel %vm118, %v117, %v111
    %v123 = vlaneseq
    %v124 = vshrl.u32 %v123, 7
    %v125 = vsub.s32 1, %v124
    %v126 = vrot.slane %v59, %v125
    %v127 = vlaneseq
    %v128 = vshrl.u32 %v127, 7
    %v129 = vsub.s32 1, %v128
    %v130 = vrot.slane %v60, %v129
    %v131 = vlaneseq
    %v132 = vshrl.u32 %v131, 7
    %v133 = vsub.s32 1, %v132
    %v134 = vrot.slane %v61, %v133
    %v135 = vlaneseq
    %v136 = vshrl.u32 %v135, 7
    %v137 = vsub.s32 1, %v136
    %v138 = vrot.slane %v62, %v137
    %v139 = vmul.f32 %v122, %v126
    %v140 = vmul.f32 %v121, %v130
    %v141 = vmul.f32 %v120, %v134
    %v142 = vmul.f32 %v119, %v138
    %143 = vst [vmem:[#allocation2 + $0x20] sm:$0xff] %v139
    %144 = vst [vmem:[#allocation2 + $0x28] sm:$0xff] %v140
    %145 = vst [vmem:[#allocation2 + $0x30] sm:$0xff] %v141
    %146 = vst [vmem:[#allocation2 + $0x38] sm:$0xff] %v142
    %147 = vrot.lane.b32.xlu0 %v55, 15
    %v148 = vpop.permute.xlu0 %147
    %149 = vrot.lane.b32.xlu0 %v56, 15
    %v150 = vpop.permute.xlu0 %149
    %151 = vrot.lane.b32.xlu0 %v57, 15
    %v152 = vpop.permute.xlu0 %151
    %153 = vrot.lane.b32.xlu0 %v58, 15
    %v154 = vpop.permute.xlu0 %153
    %vm155 = vcmp.lt.s32.totalorder %v80, 15
    %v156 = vsel %vm155, %v152, %v154
    %v157 = vsel %vm155, %v150, %v152
    %v158 = vsel %vm155, %v148, %v150
    %v159 = vsel %vm155, %v154, %v148
    %v160 = vlaneseq
    %v161 = vshrl.u32 %v160, 7
    %v162 = vsub.s32 2, %v161
    %v163 = vrot.slane %v59, %v162
    %v164 = vlaneseq
    %v165 = vshrl.u32 %v164, 7
    %v166 = vsub.s32 2, %v165
    %v167 = vrot.slane %v60, %v166
    %v168 = vlaneseq
    %v169 = vshrl.u32 %v168, 7
    %v170 = vsub.s32 2, %v169
    %v171 = vrot.slane %v61, %v170
    %v172 = vlaneseq
    %v173 = vshrl.u32 %v172, 7
    %v174 = vsub.s32 2, %v173
    %v175 = vrot.slane %v62, %v174
    %v176 = vmul.f32 %v159, %v163
    %v177 = vmul.f32 %v158, %v167
    %v178 = vmul.f32 %v157, %v171
    %v179 = vmul.f32 %v156, %v175
    %180 = vst [vmem:[#allocation2 + $0x40] sm:$0xff] %v176
    %181 = vst [vmem:[#allocation2 + $0x48] sm:$0xff] %v177
    %182 = vst [vmem:[#allocation2 + $0x50] sm:$0xff] %v178
    %183 = vst [vmem:[#allocation2 + $0x58] sm:$0xff] %v179
    %184 = vrot.lane.b32.xlu0 %v55, 1
    %v185 = vpop.permute.xlu0 %184
    %186 = vrot.lane.b32.xlu0 %v56, 1
    %v187 = vpop.permute.xlu0 %186
    %188 = vrot.lane.b32.xlu0 %v57, 1
    %v189 = vpop.permute.xlu0 %188
    %190 = vrot.lane.b32.xlu0 %v58, 1
    %v191 = vpop.permute.xlu0 %190
    %vm192 = vcmp.lt.s32.totalorder %v80, 1
    %v193 = vsel %vm192, %v189, %v191
    %v194 = vsel %vm192, %v187, %v189
    %v195 = vsel %vm192, %v185, %v187
    %v196 = vsel %vm192, %v191, %v185
    %v197 = vlaneseq
    %v198 = vshrl.u32 %v197, 7
    %v199 = vsub.s32 3, %v198
    %v200 = vrot.slane %v59, %v199
    %v201 = vlaneseq
    %v202 = vshrl.u32 %v201, 7
    %v203 = vsub.s32 3, %v202
    %v204 = vrot.slane %v60, %v203
    %v205 = vlaneseq
    %v206 = vshrl.u32 %v205, 7
    %v207 = vsub.s32 3, %v206
    %v208 = vrot.slane %v61, %v207
    %v209 = vlaneseq
    %v210 = vshrl.u32 %v209, 7
    %v211 = vsub.s32 3, %v210
    %v212 = vrot.slane %v62, %v211
    %v213 = vmul.f32 %v196, %v200
    %v214 = vmul.f32 %v195, %v204
    %v215 = vmul.f32 %v194, %v208
    %v216 = vmul.f32 %v193, %v212
    %217 = vst [vmem:[#allocation2 + $0x60] sm:$0xff] %v213
    %218 = vst [vmem:[#allocation2 + $0x68] sm:$0xff] %v214
    %219 = vst [vmem:[#allocation2 + $0x70] sm:$0xff] %v215
    %220 = vst [vmem:[#allocation2 + $0x78] sm:$0xff] %v216
    %221 = vst [vmem:[#allocation2 + $0x80] sm:$0xff] %v55
    %222 = vst [vmem:[#allocation2 + $0x88] sm:$0xff] %v56
    %223 = vst [vmem:[#allocation2 + $0x90] sm:$0xff] %v57
    %224 = vst [vmem:[#allocation2 + $0x98] sm:$0xff] %v58
    %225 = vrot.lane.b32.xlu0 %v55, 127
    %v226 = vpop.permute.xlu0 %225
    %227 = vrot.lane.b32.xlu0 %v56, 127
    %v228 = vpop.permute.xlu0 %227
    %229 = vrot.lane.b32.xlu0 %v57, 127
    %v230 = vpop.permute.xlu0 %229
    %231 = vrot.lane.b32.xlu0 %v58, 127
    %v232 = vpop.permute.xlu0 %231
    %vm233 = vcmp.lt.s32.totalorder %v80, 127
    %v234 = vsel %vm233, %v230, %v232
    %v235 = vsel %vm233, %v228, %v230
    %v236 = vsel %vm233, %v226, %v228
    %v237 = vsel %vm233, %v232, %v226
    %v238 = vlaneseq
    %v239 = vshrl.u32 %v238, 7
    %v240 = vsub.s32 4, %v239
    %v241 = vrot.slane %v59, %v240
    %v242 = vlaneseq
    %v243 = vshrl.u32 %v242, 7
    %v244 = vsub.s32 4, %v243
    %v245 = vrot.slane %v60, %v244
    %v246 = vlaneseq
    %v247 = vshrl.u32 %v246, 7
    %v248 = vsub.s32 4, %v247
    %v249 = vrot.slane %v61, %v248
    %v250 = vlaneseq
    %v251 = vshrl.u32 %v250, 7
    %v252 = vsub.s32 4, %v251
    %v253 = vrot.slane %v62, %v252
    %v254 = vmul.f32 %v236, %v241
    %v255 = vmul.f32 %v235, %v245
    %v256 = vmul.f32 %v234, %v249
    %v257 = vmul.f32 %v237, %v253
    %258 = vst [vmem:[#allocation2 + $0xa0] sm:$0xff] %v254
    %259 = vst [vmem:[#allocation2 + $0xa8] sm:$0xff] %v255
    %260 = vst [vmem:[#allocation2 + $0xb0] sm:$0xff] %v256
    %261 = vst [vmem:[#allocation2 + $0xb8] sm:$0xff] %v257
    %262 = vrot.lane.b32.xlu0 %v55, 113
    %v263 = vpop.permute.xlu0 %262
    %264 = vrot.lane.b32.xlu0 %v56, 113
    %v265 = vpop.permute.xlu0 %264
    %266 = vrot.lane.b32.xlu0 %v57, 113
    %v267 = vpop.permute.xlu0 %266
    %268 = vrot.lane.b32.xlu0 %v58, 113
    %v269 = vpop.permute.xlu0 %268
    %vm270 = vcmp.lt.s32.totalorder %v80, 113
    %v271 = vsel %vm270, %v267, %v269
    %v272 = vsel %vm270, %v265, %v267
    %v273 = vsel %vm270, %v263, %v265
    %v274 = vsel %vm270, %v269, %v263
    %v275 = vlaneseq
    %v276 = vshrl.u32 %v275, 7
    %v277 = vsub.s32 5, %v276
    %v278 = vrot.slane %v59, %v277
    %v279 = vlaneseq
    %v280 = vshrl.u32 %v279, 7
    %v281 = vsub.s32 5, %v280
    %v282 = vrot.slane %v60, %v281
    %v283 = vlaneseq
    %v284 = vshrl.u32 %v283, 7
    %v285 = vsub.s32 5, %v284
    %v286 = vrot.slane %v61, %v285
    %v287 = vlaneseq
    %v288 = vshrl.u32 %v287, 7
    %v289 = vsub.s32 5, %v288
    %v290 = vrot.slane %v62, %v289
    %v291 = vmul.f32 %v273, %v278
    %v292 = vmul.f32 %v272, %v282
    %v293 = vmul.f32 %v271, %v286
    %v294 = vmul.f32 %v274, %v290
    %295 = vst [vmem:[#allocation2 + $0xc0] sm:$0xff] %v291
    %296 = vst [vmem:[#allocation2 + $0xc8] sm:$0xff] %v292
    %297 = vst [vmem:[#allocation2 + $0xd0] sm:$0xff] %v293
    %298 = vst [vmem:[#allocation2 + $0xd8] sm:$0xff] %v294
    %299 = vrot.lane.b32.xlu0 %v55, 112
    %v300 = vpop.permute.xlu0 %299
    %301 = vrot.lane.b32.xlu0 %v56, 112
    %v302 = vpop.permute.xlu0 %301
    %303 = vrot.lane.b32.xlu0 %v57, 112
    %v304 = vpop.permute.xlu0 %303
    %305 = vrot.lane.b32.xlu0 %v58, 112
    %v306 = vpop.permute.xlu0 %305
    %vm307 = vcmp.lt.s32.totalorder %v80, 112
    %v308 = vsel %vm307, %v304, %v306
    %v309 = vsel %vm307, %v302, %v304
    %v310 = vsel %vm307, %v300, %v302
    %v311 = vsel %vm307, %v306, %v300
    %v312 = vlaneseq
    %v313 = vshrl.u32 %v312, 7
    %v314 = vsub.s32 6, %v313
    %v315 = vrot.slane %v59, %v314
    %v316 = vlaneseq
    %v317 = vshrl.u32 %v316, 7
    %v318 = vsub.s32 6, %v317
    %v319 = vrot.slane %v60, %v318
    %v320 = vlaneseq
    %v321 = vshrl.u32 %v320, 7
    %v322 = vsub.s32 6, %v321
    %v323 = vrot.slane %v61, %v322
    %v324 = vlaneseq
    %v325 = vshrl.u32 %v324, 7
    %v326 = vsub.s32 6, %v325
    %v327 = vrot.slane %v62, %v326
    %v328 = vmul.f32 %v310, %v315
    %v329 = vmul.f32 %v309, %v319
    %v330 = vmul.f32 %v308, %v323
    %v331 = vmul.f32 %v311, %v327
    %332 = vst [vmem:[#allocation2 + $0xe0] sm:$0xff] %v328
    %333 = vst [vmem:[#allocation2 + $0xe8] sm:$0xff] %v329
    %334 = vst [vmem:[#allocation2 + $0xf0] sm:$0xff] %v330
    %335 = vst [vmem:[#allocation2 + $0xf8] sm:$0xff] %v331
    %336 = vrot.lane.b32.xlu0 %v55, 111
    %v337 = vpop.permute.xlu0 %336
    %338 = vrot.lane.b32.xlu0 %v56, 111
    %v339 = vpop.permute.xlu0 %338
    %340 = vrot.lane.b32.xlu0 %v57, 111
    %v341 = vpop.permute.xlu0 %340
    %342 = vrot.lane.b32.xlu0 %v58, 111
    %v343 = vpop.permute.xlu0 %342
    %vm344 = vcmp.lt.s32.totalorder %v80, 111
    %v345 = vsel %vm344, %v341, %v343
    %v346 = vsel %vm344, %v339, %v341
    %v347 = vsel %vm344, %v337, %v339
    %v348 = vsel %vm344, %v343, %v337
    %v349 = vlaneseq
    %v350 = vshrl.u32 %v349, 7
    %v351 = vsub.s32 7, %v350
    %v352 = vrot.slane %v59, %v351
    %v353 = vlaneseq
    %v354 = vshrl.u32 %v353, 7
    %v355 = vsub.s32 7, %v354
    %v356 = vrot.slane %v60, %v355
    %v357 = vlaneseq
    %v358 = vshrl.u32 %v357, 7
    %v359 = vsub.s32 7, %v358
    %v360 = vrot.slane %v61, %v359
    %v361 = vlaneseq
    %v362 = vshrl.u32 %v361, 7
    %v363 = vsub.s32 7, %v362
    %v364 = vrot.slane %v62, %v363
    %v365 = vmul.f32 %v347, %v352
    %v366 = vmul.f32 %v346, %v356
    %v367 = vmul.f32 %v345, %v360
    %v368 = vmul.f32 %v348, %v364
    %369 = vst [vmem:[#allocation2 + $0x100] sm:$0xff] %v365
    %370 = vst [vmem:[#allocation2 + $0x108] sm:$0xff] %v366
    %371 = vst [vmem:[#allocation2 + $0x110] sm:$0xff] %v367
    %372 = vst [vmem:[#allocation2 + $0x118] sm:$0xff] %v368
    %v373 = vld [vmem:[#allocation8] sm:$0xff]
    %v374 = vld [vmem:[#allocation2] sm:$0xff]
    %v375 = vld [vmem:[#allocation2 + $0x8] sm:$0xff]
    %v376 = vld [vmem:[#allocation2 + $0x10] sm:$0xff]
    %v377 = vld [vmem:[#allocation2 + $0x18] sm:$0xff]
    %v378 = vld [vmem:[#allocation2 + $0x20] sm:$0xff]
    %v379 = vld [vmem:[#allocation2 + $0x28] sm:$0xff]
    %v380 = vld [vmem:[#allocation2 + $0x30] sm:$0xff]
    %v381 = vld [vmem:[#allocation2 + $0x38] sm:$0xff]
    %v382 = vld [vmem:[#allocation2 + $0x40] sm:$0xff]
    %v383 = vld [vmem:[#allocation2 + $0x48] sm:$0xff]
    %v384 = vld [vmem:[#allocation2 + $0x50] sm:$0xff]
    %v385 = vld [vmem:[#allocation2 + $0x58] sm:$0xff]
    %v386 = vld [vmem:[#allocation2 + $0x60] sm:$0xff]
    %v387 = vld [vmem:[#allocation2 + $0x68] sm:$0xff]
    %v388 = vld [vmem:[#allocation2 + $0x70] sm:$0xff]
    %v389 = vld [vmem:[#allocation2 + $0x78] sm:$0xff]
    %v390 = vld [vmem:[#allocation2 + $0x80] sm:$0xff]
    %v391 = vld [vmem:[#allocation2 + $0x88] sm:$0xff]
    %v392 = vld [vmem:[#allocation2 + $0x90] sm:$0xff]
    %v393 = vld [vmem:[#allocation2 + $0x98] sm:$0xff]
    %v394 = vld [vmem:[#allocation2 + $0xa0] sm:$0xff]
    %v395 = vld [vmem:[#allocation2 + $0xa8] sm:$0xff]
    %v396 = vld [vmem:[#allocation2 + $0xb0] sm:$0xff]
    %v397 = vld [vmem:[#allocation2 + $0xb8] sm:$0xff]
    %v398 = vld [vmem:[#allocation2 + $0xc0] sm:$0xff]
    %v399 = vld [vmem:[#allocation2 + $0xc8] sm:$0xff]
    %v400 = vld [vmem:[#allocation2 + $0xd0] sm:$0xff]
    %v401 = vld [vmem:[#allocation2 + $0xd8] sm:$0xff]
    %v402 = vld [vmem:[#allocation2 + $0xe0] sm:$0xff]
    %v403 = vld [vmem:[#allocation2 + $0xe8] sm:$0xff]
    %v404 = vld [vmem:[#allocation2 + $0xf0] sm:$0xff]
    %v405 = vld [vmem:[#allocation2 + $0xf8] sm:$0xff]
    %v406 = vld [vmem:[#allocation2 + $0x100] sm:$0xff]
    %v407 = vld [vmem:[#allocation2 + $0x108] sm:$0xff]
    %v408 = vld [vmem:[#allocation2 + $0x110] sm:$0xff]
    %v409 = vld [vmem:[#allocation2 + $0x118] sm:$0xff]
    %v410 = vld [vmem:[#allocation2 + $0x120] sm:$0xff]
    %v411 = vld [vmem:[#allocation2 + $0x128] sm:$0xff]
    %v412 = vld [vmem:[#allocation2 + $0x130] sm:$0xff]
    %v413 = vld [vmem:[#allocation2 + $0x138] sm:$0xff]
    %vm414 = vcmask 654336
    %v416 = vsel %vm414, %v373, 0
    %418 = vmatprep.subr.mxu0 %v375
    %419 = vmatpush1.msra.mxu0 %v374
    %420 = vmatprep.subr.mxu0 %v379
    %421 = vmatpush1.msra.mxu0 %v378
    %422 = vmatprep.subr.mxu0 %v383
    %423 = vmatpush1.msra.mxu0 %v382
    %424 = vmatprep.subr.mxu0 %v387
    %425 = vmatpush1.msra.mxu0 %v386
    %426 = vmatprep.subr.mxu0 %v391
    %427 = vmatpush1.msra.mxu0 %v390
    %428 = vmatprep.subr.mxu0 %v395
    %429 = vmatpush1.msra.mxu0 %v394
    %430 = vmatprep.subr.mxu0 %v399
    %431 = vmatpush1.msra.mxu0 %v398
    %432 = vmatprep.subr.mxu0 %v403
    %433 = vmatpush1.msra.mxu0 %v402
    %434 = vmatprep.subr.mxu0 %v407
    %435 = vmatpush1.msra.mxu0 %v406
    %436 = vmatprep.subr.mxu0 %v411
    %437 = vmatpush1.msra.mxu0 %v410
    %438 = vmatprep.subr.mxu0 0.0
    %439 = vmatpush1.msra.mxu0 0.0
    %440 = vmatprep.subr.mxu0 0.0
    %441 = vmatpush1.msra.mxu0 0.0
    %442 = vmatprep.subr.mxu0 0.0
    %443 = vmatpush1.msra.mxu0 0.0
    %444 = vmatprep.subr.mxu0 0.0
    %445 = vmatpush1.msra.mxu0 0.0
    %446 = vmatprep.subr.mxu0 0.0
    %447 = vmatpush1.msra.mxu0 0.0
    %448 = vmatprep.subr.mxu0 0.0
    %449 = vmatpush1.msra.mxu0 0.0
    %450 = vmatprep.subr.mxu0 0.0
    %451 = vmatpush1.msra.mxu0 0.0
    %452 = vmatprep.subr.mxu0 0.0
    %453 = vmatpush1.msra.mxu0 0.0
    %454 = vmatprep.subr.mxu0 0.0
    %455 = vmatpush1.msra.mxu0 0.0
    %456 = vmatprep.subr.mxu0 0.0
    %457 = vmatpush1.msra.mxu0 0.0
    %458 = vmatprep.subr.mxu0 0.0
    %459 = vmatpush1.msra.mxu0 0.0
    %460 = vmatprep.subr.mxu0 0.0
    %461 = vmatpush1.msra.mxu0 0.0
    %462 = vmatprep.subr.mxu0 0.0
    %463 = vmatpush1.msra.mxu0 0.0
    %464 = vmatprep.subr.mxu0 0.0
    %465 = vmatpush1.msra.mxu0 0.0
    %466 = vmatprep.subr.mxu0 0.0
    %467 = vmatpush1.msra.mxu0 0.0
    %468 = vmatprep.subr.mxu0 0.0
    %469 = vmatpush1.msra.mxu0 0.0
    %470 = vmatprep.subr.mxu0 0.0
    %471 = vmatpush1.msra.mxu0 0.0
    %472 = vmatprep.subr.mxu0 0.0
    %473 = vmatpush1.msra.mxu0 0.0
    %474 = vmatprep.subr.mxu0 0.0
    %475 = vmatpush1.msra.mxu0 0.0
    %476 = vmatprep.subr.mxu0 0.0
    %477 = vmatpush1.msra.mxu0 0.0
    %478 = vmatprep.subr.mxu0 0.0
    %479 = vmatpush1.msra.mxu0 0.0
    %480 = vmatprep.subr.mxu0 0.0
    %481 = vmatpush1.msra.mxu0 0.0
    %482 = vmatprep.mubr.f32.mxu0 0.0
    %483 = vmatmul.mubr.f32.gmra.mrb[0].mxu0 %v416
    %v484 = vpop.f32.mrb[0].mxu0
    %v485 = vadd.f32 0.0, %v484
    %v486 = vpop.f32.mrb[0].mxu0
    %v487 = vadd.f32 0.0, %v486
    %488 = vdwg.mxu0
    %489 = vmatprep.subr.mxu0 %v377
    %490 = vmatpush1.msra.mxu0 %v376
    %491 = vmatprep.subr.mxu0 %v381
    %492 = vmatpush1.msra.mxu0 %v380
    %493 = vmatprep.subr.mxu0 %v385
    %494 = vmatpush1.msra.mxu0 %v384
    %495 = vmatprep.subr.mxu0 %v389
    %496 = vmatpush1.msra.mxu0 %v388
    %497 = vmatprep.subr.mxu0 %v393
    %498 = vmatpush1.msra.mxu0 %v392
    %499 = vmatprep.subr.mxu0 %v397
    %500 = vmatpush1.msra.mxu0 %v396
    %501 = vmatprep.subr.mxu0 %v401
    %502 = vmatpush1.msra.mxu0 %v400
    %503 = vmatprep.subr.mxu0 %v405
    %504 = vmatpush1.msra.mxu0 %v404
    %505 = vmatprep.subr.mxu0 %v409
    %506 = vmatpush1.msra.mxu0 %v408
    %507 = vmatprep.subr.mxu0 %v413
    %508 = vmatpush1.msra.mxu0 %v412
    %509 = vmatprep.subr.mxu0 0.0
    %510 = vmatpush1.msra.mxu0 0.0
    %511 = vmatprep.subr.mxu0 0.0
    %512 = vmatpush1.msra.mxu0 0.0
    %513 = vmatprep.subr.mxu0 0.0
    %514 = vmatpush1.msra.mxu0 0.0
    %515 = vmatprep.subr.mxu0 0.0
    %516 = vmatpush1.msra.mxu0 0.0
    %517 = vmatprep.subr.mxu0 0.0
    %518 = vmatpush1.msra.mxu0 0.0
    %519 = vmatprep.subr.mxu0 0.0
    %520 = vmatpush1.msra.mxu0 0.0
    %521 = vmatprep.subr.mxu0 0.0
    %522 = vmatpush1.msra.mxu0 0.0
    %523 = vmatprep.subr.mxu0 0.0
    %524 = vmatpush1.msra.mxu0 0.0
    %525 = vmatprep.subr.mxu0 0.0
    %526 = vmatpush1.msra.mxu0 0.0
    %527 = vmatprep.subr.mxu0 0.0
    %528 = vmatpush1.msra.mxu0 0.0
    %529 = vmatprep.subr.mxu0 0.0
    %530 = vmatpush1.msra.mxu0 0.0
    %531 = vmatprep.subr.mxu0 0.0
    %532 = vmatpush1.msra.mxu0 0.0
    %533 = vmatprep.subr.mxu0 0.0
    %534 = vmatpush1.msra.mxu0 0.0
    %535 = vmatprep.subr.mxu0 0.0
    %536 = vmatpush1.msra.mxu0 0.0
    %537 = vmatprep.subr.mxu0 0.0
    %538 = vmatpush1.msra.mxu0 0.0
    %539 = vmatprep.subr.mxu0 0.0
    %540 = vmatpush1.msra.mxu0 0.0
    %541 = vmatprep.subr.mxu0 0.0
    %542 = vmatpush1.msra.mxu0 0.0
    %543 = vmatprep.subr.mxu0 0.0
    %544 = vmatpush1.msra.mxu0 0.0
    %545 = vmatprep.subr.mxu0 0.0
    %546 = vmatpush1.msra.mxu0 0.0
    %547 = vmatprep.subr.mxu0 0.0
    %548 = vmatpush1.msra.mxu0 0.0
    %549 = vmatprep.subr.mxu0 0.0
    %550 = vmatpush1.msra.mxu0 0.0
    %551 = vmatprep.subr.mxu0 0.0
    %552 = vmatpush1.msra.mxu0 0.0
    %553 = vmatprep.mubr.f32.mxu0 0.0
    %554 = vmatmul.mubr.f32.gmra.mrb[0].mxu0 %v416
    %v555 = vpop.f32.mrb[0].mxu0
    %v556 = vadd.f32 0.0, %v555
    %v557 = vpop.f32.mrb[0].mxu0
    %v558 = vadd.f32 0.0, %v557
    %559 = vdwg.mxu0
    %v560 = vmax.f32 %v485, 0.0
    %v561 = vmax.f32 %v487, 0.0
    %v562 = vmax.f32 %v556, 0.0
    %v563 = vmax.f32 %v558, 0.0
    %564 = vrot.lane.b32.xlu0 %v560, 17
    %v565 = vpop.permute.xlu0 %564
    %566 = vrot.lane.b32.xlu0 %v561, 17
    %v567 = vpop.permute.xlu0 %566
    %568 = vrot.lane.b32.xlu0 %v562, 17
    %v569 = vpop.permute.xlu0 %568
    %570 = vrot.lane.b32.xlu0 %v563, 17
    %v571 = vpop.permute.xlu0 %570
    %v572 = vsel %vm81, %v569, %v571
    %v573 = vsel %vm81, %v567, %v569
    %v574 = vsel %vm81, %v565, %v567
    %v575 = vsel %vm81, %v571, %v565
    %v576 = vmul.f32 %v575, %v89
    %v577 = vmul.f32 %v574, %v93
    %v578 = vmul.f32 %v573, %v97
    %v579 = vmul.f32 %v572, %v101
    %580 = vst [vmem:[#allocation2] sm:$0xff] %v576
    %581 = vst [vmem:[#allocation2 + $0x8] sm:$0xff] %v577
    %582 = vst [vmem:[#allocation2 + $0x10] sm:$0xff] %v578
    %583 = vst [vmem:[#allocation2 + $0x18] sm:$0xff] %v579
    %584 = vrot.lane.b32.xlu0 %v560, 16
    %v585 = vpop.permute.xlu0 %584
    %586 = vrot.lane.b32.xlu0 %v561, 16
    %v587 = vpop.permute.xlu0 %586
    %588 = vrot.lane.b32.xlu0 %v562, 16
    %v589 = vpop.permute.xlu0 %588
    %590 = vrot.lane.b32.xlu0 %v563, 16
    %v591 = vpop.permute.xlu0 %590
    %v592 = vsel %vm118, %v589, %v591
    %v593 = vsel %vm118, %v587, %v589
    %v594 = vsel %vm118, %v585, %v587
    %v595 = vsel %vm118, %v591, %v585
    %v596 = vmul.f32 %v595, %v126
    %v597 = vmul.f32 %v594, %v130
    %v598 = vmul.f32 %v593, %v134
    %v599 = vmul.f32 %v592, %v138
    %600 = vst [vmem:[#allocation2 + $0x20] sm:$0xff] %v596
    %601 = vst [vmem:[#allocation2 + $0x28] sm:$0xff] %v597
    %602 = vst [vmem:[#allocation2 + $0x30] sm:$0xff] %v598
    %603 = vst [vmem:[#allocation2 + $0x38] sm:$0xff] %v599
    %604 = vrot.lane.b32.xlu0 %v560, 15
    %v605 = vpop.permute.xlu0 %604
    %606 = vrot.lane.b32.xlu0 %v561, 15
    %v607 = vpop.permute.xlu0 %606
    %608 = vrot.lane.b32.xlu0 %v562, 15
    %v609 = vpop.permute.xlu0 %608
    %610 = vrot.lane.b32.xlu0 %v563, 15
    %v611 = vpop.permute.xlu0 %610
    %v612 = vsel %vm155, %v609, %v611
    %v613 = vsel %vm155, %v607, %v609
    %v614 = vsel %vm155, %v605, %v607
    %v615 = vsel %vm155, %v611, %v605
    %v616 = vmul.f32 %v615, %v163
    %v617 = vmul.f32 %v614, %v167
    %v618 = vmul.f32 %v613, %v171
    %v619 = vmul.f32 %v612, %v175
    %620 = vst [vmem:[#allocation2 + $0x40] sm:$0xff] %v616
    %621 = vst [vmem:[#allocation2 + $0x48] sm:$0xff] %v617
    %622 = vst [vmem:[#allocation2 + $0x50] sm:$0xff] %v618
    %623 = vst [vmem:[#allocation2 + $0x58] sm:$0xff] %v619
    %624 = vrot.lane.b32.xlu0 %v560, 1
    %v625 = vpop.permute.xlu0 %624
    %626 = vrot.lane.b32.xlu0 %v561, 1
    %v627 = vpop.permute.xlu0 %626
    %628 = vrot.lane.b32.xlu0 %v562, 1
    %v629 = vpop.permute.xlu0 %628
    %630 = vrot.lane.b32.xlu0 %v563, 1
    %v631 = vpop.permute.xlu0 %630
    %v632 = vsel %vm192, %v629, %v631
    %v633 = vsel %vm192, %v627, %v629
    %v634 = vsel %vm192, %v625, %v627
    %v635 = vsel %vm192, %v631, %v625
    %v636 = vmul.f32 %v635, %v200
    %v637 = vmul.f32 %v634, %v204
    %v638 = vmul.f32 %v633, %v208
    %v639 = vmul.f32 %v632, %v212
    %640 = vst [vmem:[#allocation2 + $0x60] sm:$0xff] %v636
    %641 = vst [vmem:[#allocation2 + $0x68] sm:$0xff] %v637
    %642 = vst [vmem:[#allocation2 + $0x70] sm:$0xff] %v638
    %643 = vst [vmem:[#allocation2 + $0x78] sm:$0xff] %v639
    %644 = vst [vmem:[#allocation2 + $0x80] sm:$0xff] %v560
    %645 = vst [vmem:[#allocation2 + $0x88] sm:$0xff] %v561
    %646 = vst [vmem:[#allocation2 + $0x90] sm:$0xff] %v562
    %647 = vst [vmem:[#allocation2 + $0x98] sm:$0xff] %v563
    %648 = vrot.lane.b32.xlu0 %v560, 127
    %v649 = vpop.permute.xlu0 %648
    %650 = vrot.lane.b32.xlu0 %v561, 127
    %v651 = vpop.permute.xlu0 %650
    %652 = vrot.lane.b32.xlu0 %v562, 127
    %v653 = vpop.permute.xlu0 %652
    %654 = vrot.lane.b32.xlu0 %v563, 127
    %v655 = vpop.permute.xlu0 %654
    %v656 = vsel %vm233, %v653, %v655
    %v657 = vsel %vm233, %v651, %v653
    %v658 = vsel %vm233, %v649, %v651
    %v659 = vsel %vm233, %v655, %v649
    %v660 = vmul.f32 %v658, %v241
    %v661 = vmul.f32 %v657, %v245
    %v662 = vmul.f32 %v656, %v249
    %v663 = vmul.f32 %v659, %v253
    %664 = vst [vmem:[#allocation2 + $0xa0] sm:$0xff] %v660
    %665 = vst [vmem:[#allocation2 + $0xa8] sm:$0xff] %v661
    %666 = vst [vmem:[#allocation2 + $0xb0] sm:$0xff] %v662
    %667 = vst [vmem:[#allocation2 + $0xb8] sm:$0xff] %v663
    %668 = vrot.lane.b32.xlu0 %v560, 113
    %v669 = vpop.permute.xlu0 %668
    %670 = vrot.lane.b32.xlu0 %v561, 113
    %v671 = vpop.permute.xlu0 %670
    %672 = vrot.lane.b32.xlu0 %v562, 113
    %v673 = vpop.permute.xlu0 %672
    %674 = vrot.lane.b32.xlu0 %v563, 113
    %v675 = vpop.permute.xlu0 %674
    %v676 = vsel %vm270, %v673, %v675
    %v677 = vsel %vm270, %v671, %v673
    %v678 = vsel %vm270, %v669, %v671
    %v679 = vsel %vm270, %v675, %v669
    %v680 = vmul.f32 %v678, %v278
    %v681 = vmul.f32 %v677, %v282
    %v682 = vmul.f32 %v676, %v286
    %v683 = vmul.f32 %v679, %v290
    %684 = vst [vmem:[#allocation2 + $0xc0] sm:$0xff] %v680
    %685 = vst [vmem:[#allocation2 + $0xc8] sm:$0xff] %v681
    %686 = vst [vmem:[#allocation2 + $0xd0] sm:$0xff] %v682
    %687 = vst [vmem:[#allocation2 + $0xd8] sm:$0xff] %v683
    %688 = vrot.lane.b32.xlu0 %v560, 112
    %v689 = vpop.permute.xlu0 %688
    %690 = vrot.lane.b32.xlu0 %v561, 112
    %v691 = vpop.permute.xlu0 %690
    %692 = vrot.lane.b32.xlu0 %v562, 112
    %v693 = vpop.permute.xlu0 %692
    %694 = vrot.lane.b32.xlu0 %v563, 112
    %v695 = vpop.permute.xlu0 %694
    %v696 = vsel %vm307, %v693, %v695
    %v697 = vsel %vm307, %v691, %v693
    %v698 = vsel %vm307, %v689, %v691
    %v699 = vsel %vm307, %v695, %v689
    %v700 = vmul.f32 %v698, %v315
    %v701 = vmul.f32 %v697, %v319
    %v702 = vmul.f32 %v696, %v323
    %v703 = vmul.f32 %v699, %v327
    %704 = vst [vmem:[#allocation2 + $0xe0] sm:$0xff] %v700
    %705 = vst [vmem:[#allocation2 + $0xe8] sm:$0xff] %v701
    %706 = vst [vmem:[#allocation2 + $0xf0] sm:$0xff] %v702
    %707 = vst [vmem:[#allocation2 + $0xf8] sm:$0xff] %v703
    %708 = vrot.lane.b32.xlu0 %v560, 111
    %v709 = vpop.permute.xlu0 %708
    %710 = vrot.lane.b32.xlu0 %v561, 111
    %v711 = vpop.permute.xlu0 %710
    %712 = vrot.lane.b32.xlu0 %v562, 111
    %v713 = vpop.permute.xlu0 %712
    %714 = vrot.lane.b32.xlu0 %v563, 111
    %v715 = vpop.permute.xlu0 %714
    %v716 = vsel %vm344, %v713, %v715
    %v717 = vsel %vm344, %v711, %v713
    %v718 = vsel %vm344, %v709, %v711
    %v719 = vsel %vm344, %v715, %v709
    %v720 = vmul.f32 %v718, %v352
    %v721 = vmul.f32 %v717, %v356
    %v722 = vmul.f32 %v716, %v360
    %v723 = vmul.f32 %v719, %v364
    %724 = vst [vmem:[#allocation2 + $0x100] sm:$0xff] %v720
    %725 = vst [vmem:[#allocation2 + $0x108] sm:$0xff] %v721
    %726 = vst [vmem:[#allocation2 + $0x110] sm:$0xff] %v722
    %727 = vst [vmem:[#allocation2 + $0x118] sm:$0xff] %v723
    %v728 = vld [vmem:[%s3] sm:$0xff]
    %v729 = vld [vmem:[#allocation2] sm:$0xff]
    %v730 = vld [vmem:[#allocation2 + $0x8] sm:$0xff]
    %v731 = vld [vmem:[#allocation2 + $0x10] sm:$0xff]
    %v732 = vld [vmem:[#allocation2 + $0x18] sm:$0xff]
    %v733 = vld [vmem:[#allocation2 + $0x20] sm:$0xff]
    %v734 = vld [vmem:[#allocation2 + $0x28] sm:$0xff]
    %v735 = vld [vmem:[#allocation2 + $0x30] sm:$0xff]
    %v736 = vld [vmem:[#allocation2 + $0x38] sm:$0xff]
    %v737 = vld [vmem:[#allocation2 + $0x40] sm:$0xff]
    %v738 = vld [vmem:[#allocation2 + $0x48] sm:$0xff]
    %v739 = vld [vmem:[#allocation2 + $0x50] sm:$0xff]
    %v740 = vld [vmem:[#allocation2 + $0x58] sm:$0xff]
    %v741 = vld [vmem:[#allocation2 + $0x60] sm:$0xff]
    %v742 = vld [vmem:[#allocation2 + $0x68] sm:$0xff]
    %v743 = vld [vmem:[#allocation2 + $0x70] sm:$0xff]
    %v744 = vld [vmem:[#allocation2 + $0x78] sm:$0xff]
    %v745 = vld [vmem:[#allocation2 + $0x80] sm:$0xff]
    %v746 = vld [vmem:[#allocation2 + $0x88] sm:$0xff]
    %v747 = vld [vmem:[#allocation2 + $0x90] sm:$0xff]
    %v748 = vld [vmem:[#allocation2 + $0x98] sm:$0xff]
    %v749 = vld [vmem:[#allocation2 + $0xa0] sm:$0xff]
    %v750 = vld [vmem:[#allocation2 + $0xa8] sm:$0xff]
    %v751 = vld [vmem:[#allocation2 + $0xb0] sm:$0xff]
    %v752 = vld [vmem:[#allocation2 + $0xb8] sm:$0xff]
    %v753 = vld [vmem:[#allocation2 + $0xc0] sm:$0xff]
    %v754 = vld [vmem:[#allocation2 + $0xc8] sm:$0xff]
    %v755 = vld [vmem:[#allocation2 + $0xd0] sm:$0xff]
    %v756 = vld [vmem:[#allocation2 + $0xd8] sm:$0xff]
    %v757 = vld [vmem:[#allocation2 + $0xe0] sm:$0xff]
    %v758 = vld [vmem:[#allocation2 + $0xe8] sm:$0xff]
    %v759 = vld [vmem:[#allocation2 + $0xf0] sm:$0xff]
    %v760 = vld [vmem:[#allocation2 + $0xf8] sm:$0xff]
    %v761 = vld [vmem:[#allocation2 + $0x100] sm:$0xff]
    %v762 = vld [vmem:[#allocation2 + $0x108] sm:$0xff]
    %v763 = vld [vmem:[#allocation2 + $0x110] sm:$0xff]
    %v764 = vld [vmem:[#allocation2 + $0x118] sm:$0xff]
    %v765 = vld [vmem:[#allocation2 + $0x120] sm:$0xff]
    %v766 = vld [vmem:[#allocation2 + $0x128] sm:$0xff]
    %v767 = vld [vmem:[#allocation2 + $0x130] sm:$0xff]
    %v768 = vld [vmem:[#allocation2 + $0x138] sm:$0xff]
    %v770 = vsel %vm414, %v728, 0
    %772 = vmatprep.subr.mxu0 %v730
    %773 = vmatpush1.msra.mxu0 %v729
    %774 = vmatprep.subr.mxu0 %v734
    %775 = vmatpush1.msra.mxu0 %v733
    %776 = vmatprep.subr.mxu0 %v738
    %777 = vmatpush1.msra.mxu0 %v737
    %778 = vmatprep.subr.mxu0 %v742
    %779 = vmatpush1.msra.mxu0 %v741
    %780 = vmatprep.subr.mxu0 %v746
    %781 = vmatpush1.msra.mxu0 %v745
    %782 = vmatprep.subr.mxu0 %v750
    %783 = vmatpush1.msra.mxu0 %v749
    %784 = vmatprep.subr.mxu0 %v754
    %785 = vmatpush1.msra.mxu0 %v753
    %786 = vmatprep.subr.mxu0 %v758
    %787 = vmatpush1.msra.mxu0 %v757
    %788 = vmatprep.subr.mxu0 %v762
    %789 = vmatpush1.msra.mxu0 %v761
    %790 = vmatprep.subr.mxu0 %v766
    %791 = vmatpush1.msra.mxu0 %v765
    %792 = vmatprep.subr.mxu0 0.0
    %793 = vmatpush1.msra.mxu0 0.0
    %794 = vmatprep.subr.mxu0 0.0
    %795 = vmatpush1.msra.mxu0 0.0
    %796 = vmatprep.subr.mxu0 0.0
    %797 = vmatpush1.msra.mxu0 0.0
    %798 = vmatprep.subr.mxu0 0.0
    %799 = vmatpush1.msra.mxu0 0.0
    %800 = vmatprep.subr.mxu0 0.0
    %801 = vmatpush1.msra.mxu0 0.0
    %802 = vmatprep.subr.mxu0 0.0
    %803 = vmatpush1.msra.mxu0 0.0
    %804 = vmatprep.subr.mxu0 0.0
    %805 = vmatpush1.msra.mxu0 0.0
    %806 = vmatprep.subr.mxu0 0.0
    %807 = vmatpush1.msra.mxu0 0.0
    %808 = vmatprep.subr.mxu0 0.0
    %809 = vmatpush1.msra.mxu0 0.0
    %810 = vmatprep.subr.mxu0 0.0
    %811 = vmatpush1.msra.mxu0 0.0
    %812 = vmatprep.subr.mxu0 0.0
    %813 = vmatpush1.msra.mxu0 0.0
    %814 = vmatprep.subr.mxu0 0.0
    %815 = vmatpush1.msra.mxu0 0.0
    %816 = vmatprep.subr.mxu0 0.0
    %817 = vmatpush1.msra.mxu0 0.0
    %818 = vmatprep.subr.mxu0 0.0
    %819 = vmatpush1.msra.mxu0 0.0
    %820 = vmatprep.subr.mxu0 0.0
    %821 = vmatpush1.msra.mxu0 0.0
    %822 = vmatprep.subr.mxu0 0.0
    %823 = vmatpush1.msra.mxu0 0.0
    %824 = vmatprep.subr.mxu0 0.0
    %825 = vmatpush1.msra.mxu0 0.0
    %826 = vmatprep.subr.mxu0 0.0
    %827 = vmatpush1.msra.mxu0 0.0
    %828 = vmatprep.subr.mxu0 0.0
    %829 = vmatpush1.msra.mxu0 0.0
    %830 = vmatprep.subr.mxu0 0.0
    %831 = vmatpush1.msra.mxu0 0.0
    %832 = vmatprep.subr.mxu0 0.0
    %833 = vmatpush1.msra.mxu0 0.0
    %834 = vmatprep.subr.mxu0 0.0
    %835 = vmatpush1.msra.mxu0 0.0
    %836 = vmatprep.mubr.f32.mxu0 0.0
    %837 = vmatmul.mubr.f32.gmra.mrb[0].mxu0 %v770
    %v838 = vpop.f32.mrb[0].mxu0
    %v839 = vadd.f32 %v55, %v838
    %v840 = vpop.f32.mrb[0].mxu0
    %v841 = vadd.f32 %v56, %v840
    %842 = vdwg.mxu0
    %843 = vmatprep.subr.mxu0 %v732
    %844 = vmatpush1.msra.mxu0 %v731
    %845 = vmatprep.subr.mxu0 %v736
    %846 = vmatpush1.msra.mxu0 %v735
    %847 = vmatprep.subr.mxu0 %v740
    %848 = vmatpush1.msra.mxu0 %v739
    %849 = vmatprep.subr.mxu0 %v744
    %850 = vmatpush1.msra.mxu0 %v743
    %851 = vmatprep.subr.mxu0 %v748
    %852 = vmatpush1.msra.mxu0 %v747
    %853 = vmatprep.subr.mxu0 %v752
    %854 = vmatpush1.msra.mxu0 %v751
    %855 = vmatprep.subr.mxu0 %v756
    %856 = vmatpush1.msra.mxu0 %v755
    %857 = vmatprep.subr.mxu0 %v760
    %858 = vmatpush1.msra.mxu0 %v759
    %859 = vmatprep.subr.mxu0 %v764
    %860 = vmatpush1.msra.mxu0 %v763
    %861 = vmatprep.subr.mxu0 %v768
    %862 = vmatpush1.msra.mxu0 %v767
    %863 = vmatprep.subr.mxu0 0.0
    %864 = vmatpush1.msra.mxu0 0.0
    %865 = vmatprep.subr.mxu0 0.0
    %866 = vmatpush1.msra.mxu0 0.0
    %867 = vmatprep.subr.mxu0 0.0
    %868 = vmatpush1.msra.mxu0 0.0
    %869 = vmatprep.subr.mxu0 0.0
    %870 = vmatpush1.msra.mxu0 0.0
    %871 = vmatprep.subr.mxu0 0.0
    %872 = vmatpush1.msra.mxu0 0.0
    %873 = vmatprep.subr.mxu0 0.0
    %874 = vmatpush1.msra.mxu0 0.0
    %875 = vmatprep.subr.mxu0 0.0
    %876 = vmatpush1.msra.mxu0 0.0
    %877 = vmatprep.subr.mxu0 0.0
    %878 = vmatpush1.msra.mxu0 0.0
    %879 = vmatprep.subr.mxu0 0.0
    %880 = vmatpush1.msra.mxu0 0.0
    %881 = vmatprep.subr.mxu0 0.0
    %882 = vmatpush1.msra.mxu0 0.0
    %883 = vmatprep.subr.mxu0 0.0
    %884 = vmatpush1.msra.mxu0 0.0
    %885 = vmatprep.subr.mxu0 0.0
    %886 = vmatpush1.msra.mxu0 0.0
    %887 = vmatprep.subr.mxu0 0.0
    %888 = vmatpush1.msra.mxu0 0.0
    %889 = vmatprep.subr.mxu0 0.0
    %890 = vmatpush1.msra.mxu0 0.0
    %891 = vmatprep.subr.mxu0 0.0
    %892 = vmatpush1.msra.mxu0 0.0
    %893 = vmatprep.subr.mxu0 0.0
    %894 = vmatpush1.msra.mxu0 0.0
    %895 = vmatprep.subr.mxu0 0.0
    %896 = vmatpush1.msra.mxu0 0.0
    %897 = vmatprep.subr.mxu0 0.0
    %898 = vmatpush1.msra.mxu0 0.0
    %899 = vmatprep.subr.mxu0 0.0
    %900 = vmatpush1.msra.mxu0 0.0
    %901 = vmatprep.subr.mxu0 0.0
    %902 = vmatpush1.msra.mxu0 0.0
    %903 = vmatprep.subr.mxu0 0.0
    %904 = vmatpush1.msra.mxu0 0.0
    %905 = vmatprep.subr.mxu0 0.0
    %906 = vmatpush1.msra.mxu0 0.0
    %907 = vmatprep.mubr.f32.mxu0 0.0
    %908 = vmatmul.mubr.f32.gmra.mrb[0].mxu0 %v770
    %v909 = vpop.f32.mrb[0].mxu0
    %v910 = vadd.f32 %v57, %v909
    %v911 = vpop.f32.mrb[0].mxu0
    %v912 = vadd.f32 %v58, %v911
    %913 = vdwg.mxu0
    %914 = vst [vmem:[#allocation9] sm:$0xff] %v839
    %915 = vst [vmem:[#allocation9 + $0x8] sm:$0xff] %v841
    %916 = vst [vmem:[#allocation9 + $0x10] sm:$0xff] %v910
    %917 = vst [vmem:[#allocation9 + $0x18] sm:$0xff] %v912
    // Predicated region
    $region30: #{tpu_custom_call.1} parent=1 // pred_check
      _
    $region31: #{tpu_custom_call.1} parent=1 // pred_check_branch
      %919 = sbr.rel (0) target = $region33
    $region32: #{tpu_custom_call.1} parent=1 // pred_region
      %s921 = ssub.s32 512, 512
      %922 = vsyncadd [#allocation5], %s921
      %s924 = sshll.u32 [#allocation9], 4
      %s925 = int_to_ptr.vmem [resolvable:$true] %s924
      %927 = dma.vmem_to_hbm [thread:$0]  %s925, 512, %s4, [#allocation5]
    $region33: #{tpu_custom_call.1} parent=1 // pred_fallthru
      _
    // Predicated region
    $region34: #{tpu_custom_call.1} parent=1 // pred_check
      _
    $region35: #{tpu_custom_call.1} parent=1 // pred_check_branch
      %929 = sbr.rel (0) target = $region37
    $region36: #{tpu_custom_call.1} parent=1 // pred_region
      %930 = dma.done [#allocation5], 512
    $region37: #{tpu_custom_call.1} parent=1 // pred_fallthru
      _
    %931 = vsyncpa [#allocation4], 1
    %932 = vsyncpa [#allocation7], 1
    %933 = vsyncpa [#allocation5], 1

</llo_original>
